<compile_context>
chip_gen: v6e
topology: v6e:2x2x1
jax: 0.10.0
libtpu: 0.0.40
codegen_flags: <defaults>
</compile_context>

<pallas_src>
import functools

import jax
import jax.numpy as jnp
from jax.experimental import pallas as pl
from jax.experimental.pallas import tpu as pltpu

_LANE = 128
_TARGET_BLOCK_BYTES = 2 << 20  # ~2 MiB of f32 per input block


def _dice_partial_kernel(x_ref, t_ref, inter_out_ref, tsum_out_ref,
                         acc_inter_ref, acc_tsum_ref, *, hw_total, needs_mask):
    j = pl.program_id(2)
    n_j = pl.num_programs(2)

    @pl.when(j == 0)
    def _():
        acc_inter_ref[...] = jnp.zeros_like(acc_inter_ref)
        acc_tsum_ref[...] = jnp.zeros_like(acc_tsum_ref)

    x = x_ref[...].astype(jnp.float32)   # (C, hw_tile), spatial on lanes
    t = t_ref[...].astype(jnp.float32)   # (C, hw_tile)

    # Per-pixel softmax over the channel (sublane) axis.
    m = jnp.max(x, axis=0, keepdims=True)                 # (1, hw_tile)
    e = jnp.exp(x - m)
    denom = jnp.sum(e, axis=0, keepdims=True)             # (1, hw_tile)
    p = e * pl.reciprocal(denom, approx=True)             # EUP slot, co-issues w/ VPU

    inter = p * t
    tval = t
    if needs_mask:
        hw_tile = x_ref.shape[-1]
        start = (pl.program_id(1) * n_j + j) * hw_tile
        lane = jax.lax.broadcasted_iota(jnp.int32, (1, hw_tile), 1)
        valid = (start + lane) < hw_total
        inter = jnp.where(valid, inter, 0.0)
        tval = jnp.where(valid, tval, 0.0)

    # Pure VPU element-wise accumulation; no per-step cross-lane reductions.
    acc_inter_ref[...] += inter
    acc_tsum_ref[...] += tval

    @pl.when(j == n_j - 1)
    def _():
        inter_sum = jnp.sum(acc_inter_ref[...])
        tsum_sum = jnp.sum(acc_tsum_ref[...])
        inter_out_ref[...] = jnp.full(inter_out_ref.shape, inter_sum, jnp.float32)
        tsum_out_ref[...] = jnp.full(tsum_out_ref.shape, tsum_sum, jnp.float32)


def custom_dice_loss(inputs_nchw, targets_nchw, smooth=1.0, *,
                     target_block_bytes=_TARGET_BLOCK_BYTES):
    """JAX/Pallas equivalent of CustomDiceLoss.forward (softmax over dim=1 + dice)."""
    B, C, H, W = inputs_nchw.shape
    assert targets_nchw.shape == inputs_nchw.shape
    HW = H * W

    # Free reshapes only (no transpose, no dtype widening) -> minimal HBM traffic.
    x = inputs_nchw.reshape(B, C, HW)
    t = targets_nchw.reshape(B, C, HW)

    # Spatial tile on the lane axis: multiple of 128, sized by f32 bytes per block.
    hw_tile_max = max(_LANE, (target_block_bytes // (C * 4)) // _LANE * _LANE)
    if HW <= hw_tile_max:
        hw_tile = HW
        n_tiles = 1
    else:
        hw_tile = hw_tile_max
        n_tiles = pl.cdiv(HW, hw_tile)
    needs_mask = (n_tiles * hw_tile != HW)

    # Extra parallel grid axis so v7x's two TensorCores both get work (no-op on v5e/v6e).
    n_par = 2 if (n_tiles >= 2 and n_tiles % 2 == 0) else 1
    n_j = n_tiles // n_par

    kernel = functools.partial(_dice_partial_kernel, hw_total=HW, needs_mask=needs_mask)

    in_spec = pl.BlockSpec((None, C, hw_tile), lambda b, p, j: (b, 0, p * n_j + j))
    out_spec = pl.BlockSpec((None, None, 1, _LANE), lambda b, p, j: (b, p, 0, 0))

    inter_part, tsum_part = pl.pallas_call(
        kernel,
        out_shape=(
            jax.ShapeDtypeStruct((B, n_par, 1, _LANE), jnp.float32),
            jax.ShapeDtypeStruct((B, n_par, 1, _LANE), jnp.float32),
        ),
        grid_spec=pltpu.PrefetchScalarGridSpec(
            num_scalar_prefetch=0,
            grid=(B, n_par, n_j),
            in_specs=[in_spec, in_spec],
            out_specs=(out_spec, out_spec),
            scratch_shapes=[
                pltpu.VMEM((C, hw_tile), jnp.float32),  # per-lane partials of sum(p*t)
                pltpu.VMEM((C, hw_tile), jnp.float32),  # per-lane partials of sum(t)
            ],
        ),
        compiler_params=pltpu.CompilerParams(
            dimension_semantics=("parallel", "parallel", "arbitrary"),
            vmem_limit_bytes=32 * 1024 * 1024,
        ),
    )(x, t)

    intersection = jnp.sum(inter_part[..., 0])
    targets_sum = jnp.sum(tsum_part[..., 0])
    # softmax sums to exactly 1 per pixel -> global softmax(inputs) sum == B*H*W.
    inputs_sum = jnp.float32(B * HW)
    dice = (2.0 * intersection + smooth) / (inputs_sum + targets_sum + smooth)
    return 1.0 - dice


def _reference_dice_loss(inputs_nchw, targets_nchw, smooth=1.0):
    p = jax.nn.softmax(inputs_nchw.astype(jnp.float32), axis=1).reshape(-1)
    t = targets_nchw.astype(jnp.float32).reshape(-1)
    inter = jnp.sum(p * t)
    dice = (2.0 * inter + smooth) / (jnp.sum(p) + jnp.sum(t) + smooth)
    return 1.0 - dice


if __name__ == "__main__":
    key = jax.random.PRNGKey(0)
    k1, k2 = jax.random.split(key)

    # Main small test (single spatial tile, full-extent lane block).
    B, C, H, W = 2, 4, 16, 16
    inputs = jax.random.normal(k1, (B, C, H, W), dtype=jnp.float32)
    targets = (jax.random.uniform(k2, (B, C, H, W)) > 0.5).astype(jnp.float32)

    loss = jax.block_until_ready(custom_dice_loss(inputs, targets, smooth=1.0))
    ref = jax.block_until_ready(_reference_dice_loss(inputs, targets, smooth=1.0))
    assert jnp.isfinite(loss), "kernel produced non-finite loss"
    # Tolerance allows for the EUP approx reciprocal in the softmax normalization.
    assert jnp.abs(loss - ref) < 3e-3, f"mismatch: kernel={loss}, ref={ref}"

    # Second tiny test exercising the multi-tile / masked / dual-parallel grid path.
    B2, C2, H2, W2 = 2, 4, 12, 12  # HW=144 -> two 128-lane tiles, last one masked
    inputs2 = jax.random.normal(k1, (B2, C2, H2, W2), dtype=jnp.float32)
    targets2 = (jax.random.uniform(k2, (B2, C2, H2, W2)) > 0.5).astype(jnp.float32)
    loss2 = jax.block_until_ready(
        custom_dice_loss(inputs2, targets2, smooth=1.0, target_block_bytes=2048))
    ref2 = jax.block_until_ready(_reference_dice_loss(inputs2, targets2, smooth=1.0))
    assert jnp.isfinite(loss2), "kernel produced non-finite loss (masked path)"
    assert jnp.abs(loss2 - ref2) < 3e-3, f"mismatch (masked): kernel={loss2}, ref={ref2}"

    print("KERNEL_OK")
</pallas_src>

<mosaic_0001>
module attributes {stable_mosaic.version = 11 : i64} {
  func.func @_dice_partial_kernel(%arg0: i32, %arg1: i32, %arg2: i32, %arg3: memref<1x4x256xf32, #tpu.memory_space<vmem>>, %arg4: memref<1x4x256xf32, #tpu.memory_space<vmem>>, %arg5: memref<1x1x1x128xf32, #tpu.memory_space<vmem>>, %arg6: memref<1x1x1x128xf32, #tpu.memory_space<vmem>>, %arg7: memref<4x256xf32, #tpu.memory_space<vmem>>, %arg8: memref<4x256xf32, #tpu.memory_space<vmem>>) attributes {dimension_semantics = [#tpu.dimension_semantics<parallel>, #tpu.dimension_semantics<parallel>, #tpu.dimension_semantics<arbitrary>], iteration_bounds = array<i64: 2, 1, 1>, scalar_prefetch = 0 : i64, scratch_operands = 2 : i64, tpu.core_type = #tpu.core_type<tc>, window_params = [{transform_indices = @transform_0, window_bounds = array<i64: 1, 4, 256>}, {transform_indices = @transform_1, window_bounds = array<i64: 1, 4, 256>}, {transform_indices = @transform_2, window_bounds = array<i64: 1, 1, 1, 128>}, {transform_indices = @transform_3, window_bounds = array<i64: 1, 1, 1, 128>}]} {
    %c0_i32 = arith.constant 0 : i32
    %0 = arith.cmpi eq, %arg2, %c0_i32 : i32
    %1 = arith.extui %0 : i1 to i32
    %c0_i32_0 = arith.constant 0 : i32
    %2 = arith.cmpi ne, %1, %c0_i32_0 : i32
    scf.if %2 {
      %cst_17 = arith.constant 0.000000e+00 : f32
      %27 = vector.broadcast %cst_17 : f32 to vector<4x256xf32>
      %c0_18 = arith.constant 0 : index
      %c0_19 = arith.constant 0 : index
      %28 = vector.load %arg7[%c0_18, %c0_19] : memref<4x256xf32, #tpu.memory_space<vmem>>, vector<4x256xf32>
      tpu.vector_store %arg7[%c0_18, %c0_19], %27 {strides = array<i32>} : memref<4x256xf32, #tpu.memory_space<vmem>>, vector<4x256xf32>,
      %cst_20 = arith.constant 0.000000e+00 : f32
      %29 = vector.broadcast %cst_20 : f32 to vector<4x256xf32>
      %c0_21 = arith.constant 0 : index
      %c0_22 = arith.constant 0 : index
      %30 = vector.load %arg8[%c0_21, %c0_22] : memref<4x256xf32, #tpu.memory_space<vmem>>, vector<4x256xf32>
      tpu.vector_store %arg8[%c0_21, %c0_22], %29 {strides = array<i32>} : memref<4x256xf32, #tpu.memory_space<vmem>>, vector<4x256xf32>,
    } else {
    }
    %c0 = arith.constant 0 : index
    %c0_1 = arith.constant 0 : index
    %c0_2 = arith.constant 0 : index
    %3 = vector.load %arg3[%c0, %c0_1, %c0_2] : memref<1x4x256xf32, #tpu.memory_space<vmem>>, vector<1x4x256xf32>
    %4 = vector.shape_cast %3 : vector<1x4x256xf32> to vector<4x256xf32>
    %c0_3 = arith.constant 0 : index
    %c0_4 = arith.constant 0 : index
    %c0_5 = arith.constant 0 : index
    %5 = vector.load %arg4[%c0_3, %c0_4, %c0_5] : memref<1x4x256xf32, #tpu.memory_space<vmem>>, vector<1x4x256xf32>
    %6 = vector.shape_cast %5 : vector<1x4x256xf32> to vector<4x256xf32>
    %cst = arith.constant dense<0xFF800000> : vector<256xf32>
    %7 = vector.multi_reduction <maximumf>, %4, %cst [0] : vector<4x256xf32> to vector<256xf32>
    %8 = vector.shape_cast %7 : vector<256xf32> to vector<1x256xf32>
    %9 = vector.broadcast %8 : vector<1x256xf32> to vector<4x256xf32>
    %10 = arith.subf %4, %9 : vector<4x256xf32>
    %11 = math.exp %10 : vector<4x256xf32>
    %cst_6 = arith.constant dense<0.000000e+00> : vector<256xf32>
    %12 = vector.multi_reduction <add>, %11, %cst_6 [0] : vector<4x256xf32> to vector<256xf32>
    %13 = vector.shape_cast %12 : vector<256xf32> to vector<1x256xf32>
    %14 = tpu.reciprocal %13 {approx = true} : vector<1x256xf32> -> vector<1x256xf32>
    %15 = vector.broadcast %14 : vector<1x256xf32> to vector<4x256xf32>
    %16 = arith.mulf %11, %15 : vector<4x256xf32>
    %17 = arith.mulf %16, %6 : vector<4x256xf32>
    %c0_7 = arith.constant 0 : index
    %c0_8 = arith.constant 0 : index
    %18 = vector.load %arg7[%c0_7, %c0_8] : memref<4x256xf32, #tpu.memory_space<vmem>>, vector<4x256xf32>
    %19 = arith.addf %18, %17 : vector<4x256xf32>
    %c0_9 = arith.constant 0 : index
    %c0_10 = arith.constant 0 : index
    %20 = vector.load %arg7[%c0_9, %c0_10] : memref<4x256xf32, #tpu.memory_space<vmem>>, vector<4x256xf32>
    tpu.vector_store %arg7[%c0_9, %c0_10], %19 {strides = array<i32>} : memref<4x256xf32, #tpu.memory_space<vmem>>, vector<4x256xf32>,
    %c0_11 = arith.constant 0 : index
    %c0_12 = arith.constant 0 : index
    %21 = vector.load %arg8[%c0_11, %c0_12] : memref<4x256xf32, #tpu.memory_space<vmem>>, vector<4x256xf32>
    %22 = arith.addf %21, %6 : vector<4x256xf32>
    %c0_13 = arith.constant 0 : index
    %c0_14 = arith.constant 0 : index
    %23 = vector.load %arg8[%c0_13, %c0_14] : memref<4x256xf32, #tpu.memory_space<vmem>>, vector<4x256xf32>
    tpu.vector_store %arg8[%c0_13, %c0_14], %22 {strides = array<i32>} : memref<4x256xf32, #tpu.memory_space<vmem>>, vector<4x256xf32>,
    %c0_i32_15 = arith.constant 0 : i32
    %24 = arith.cmpi eq, %arg2, %c0_i32_15 : i32
    %25 = arith.extui %24 : i1 to i32
    %c0_i32_16 = arith.constant 0 : i32
    %26 = arith.cmpi ne, %25, %c0_i32_16 : i32
    scf.if %26 {
      %c0_17 = arith.constant 0 : index
      %c0_18 = arith.constant 0 : index
      %27 = vector.load %arg7[%c0_17, %c0_18] : memref<4x256xf32, #tpu.memory_space<vmem>>, vector<4x256xf32>
      %28 = vector.shape_cast %27 : vector<4x256xf32> to vector<1x4x256xf32>
      %cst_19 = arith.constant dense<0.000000e+00> : vector<1xf32>
      %29 = vector.multi_reduction <add>, %28, %cst_19 [1, 2] : vector<1x4x256xf32> to vector<1xf32>
      %30 = vector.shape_cast %29 : vector<1xf32> to vector<1x1x1xf32>
      %31 = vector.extract %30[0, 0, 0] : f32 from vector<1x1x1xf32>
      %c0_20 = arith.constant 0 : index
      %c0_21 = arith.constant 0 : index
      %32 = vector.load %arg8[%c0_20, %c0_21] : memref<4x256xf32, #tpu.memory_space<vmem>>, vector<4x256xf32>
      %33 = vector.shape_cast %32 : vector<4x256xf32> to vector<1x4x256xf32>
      %cst_22 = arith.constant dense<0.000000e+00> : vector<1xf32>
      %34 = vector.multi_reduction <add>, %33, %cst_22 [1, 2] : vector<1x4x256xf32> to vector<1xf32>
      %35 = vector.shape_cast %34 : vector<1xf32> to vector<1x1x1xf32>
      %36 = vector.extract %35[0, 0, 0] : f32 from vector<1x1x1xf32>
      %37 = vector.broadcast %31 : f32 to vector<1x128xf32>
      %c0_23 = arith.constant 0 : index
      %c0_24 = arith.constant 0 : index
      %c0_25 = arith.constant 0 : index
      %c0_26 = arith.constant 0 : index
      %38 = vector.load %arg5[%c0_23, %c0_24, %c0_25, %c0_26] : memref<1x1x1x128xf32, #tpu.memory_space<vmem>>, vector<1x1x1x128xf32>
      %39 = vector.shape_cast %38 : vector<1x1x1x128xf32> to vector<1x128xf32>
      %40 = vector.shape_cast %37 : vector<1x128xf32> to vector<1x1x1x128xf32>
      tpu.vector_store %arg5[%c0_23, %c0_24, %c0_25, %c0_26], %40 {strides = array<i32>} : memref<1x1x1x128xf32, #tpu.memory_space<vmem>>, vector<1x1x1x128xf32>,
      %41 = vector.broadcast %36 : f32 to vector<1x128xf32>
      %c0_27 = arith.constant 0 : index
      %c0_28 = arith.constant 0 : index
      %c0_29 = arith.constant 0 : index
      %c0_30 = arith.constant 0 : index
      %42 = vector.load %arg6[%c0_27, %c0_28, %c0_29, %c0_30] : memref<1x1x1x128xf32, #tpu.memory_space<vmem>>, vector<1x1x1x128xf32>
      %43 = vector.shape_cast %42 : vector<1x1x1x128xf32> to vector<1x128xf32>
      %44 = vector.shape_cast %41 : vector<1x128xf32> to vector<1x1x1x128xf32>
      tpu.vector_store %arg6[%c0_27, %c0_28, %c0_29, %c0_30], %44 {strides = array<i32>} : memref<1x1x1x128xf32, #tpu.memory_space<vmem>>, vector<1x1x1x128xf32>,
    } else {
    }
    return
  }
  func.func @transform_0(%arg0: i32, %arg1: i32, %arg2: i32) -> (i32, i32, i32) {
    %c1_i32 = arith.constant 1 : i32
    %0 = arith.muli %arg1, %c1_i32 : i32
    %1 = arith.addi %0, %arg2 : i32
    %c0_i32 = arith.constant 0 : i32
    %c0_i32_0 = arith.constant 0 : i32
    return %arg0, %c0_i32, %1 : i32, i32, i32
  }
  func.func @transform_1(%arg0: i32, %arg1: i32, %arg2: i32) -> (i32, i32, i32) {
    %c1_i32 = arith.constant 1 : i32
    %0 = arith.muli %arg1, %c1_i32 : i32
    %1 = arith.addi %0, %arg2 : i32
    %c0_i32 = arith.constant 0 : i32
    %c0_i32_0 = arith.constant 0 : i32
    return %arg0, %c0_i32, %1 : i32, i32, i32
  }
  func.func @transform_2(%arg0: i32, %arg1: i32, %arg2: i32) -> (i32, i32, i32, i32) {
    %c0_i32 = arith.constant 0 : i32
    %c0_i32_0 = arith.constant 0 : i32
    %c0_i32_1 = arith.constant 0 : i32
    return %arg0, %arg1, %c0_i32, %c0_i32_0 : i32, i32, i32, i32
  }
  func.func @transform_3(%arg0: i32, %arg1: i32, %arg2: i32) -> (i32, i32, i32, i32) {
    %c0_i32 = arith.constant 0 : i32
    %c0_i32_0 = arith.constant 0 : i32
    %c0_i32_1 = arith.constant 0 : i32
    return %arg0, %arg1, %c0_i32, %c0_i32_0 : i32, i32, i32, i32
  }
}

</mosaic_0001>

<llo_original>
// kernel: tpu_custom_call.1
$region0: #{tpu_custom_call.1}
  #allocation0 [shape = 'u32[]', space=smem, size = 0x4, offset = 0x4, fixed_abs, tag = 'smem constant byte address 0x4 - core index']
  #allocation1 [shape = 'u32[144,128]{1,0:T(1,128)}', space=vmem, size = 0x12000, scoped, tag = 'internal scratch']
  #allocation2 [shape = 'f32[4,256]{1,0:T(4,128)}', space=vmem, size = 0x1000, scoped, tag = 'scratch operand']
  #allocation3 [shape = 'f32[4,256]{1,0:T(4,128)}', space=vmem, size = 0x1000, scoped, tag = 'scratch operand']
  %s0 = inlined_call_operand.hbm [shape: f32[2,4,256], index: 0, kind: input, shape index: {}]
  %s1 = inlined_call_operand.hbm [shape: f32[2,4,256], index: 1, kind: input, shape index: {}]
  %s2 = inlined_call_operand.hbm [shape: f32[2,1,1,128], index: 2, kind: output, shape index: {0}]
  %s3 = inlined_call_operand.hbm [shape: f32[2,1,1,128], index: 3, kind: output, shape index: {1}]
  %4 = xla_tuple %s2, %s3
  %s5 = sld [smem:[#allocation0]]
  $region65: #{tpu_custom_call.1} parent=0
    _
  %s7 = ssub.s32 1, %s5
  %s8 = scalar_select 0, %s7, %s5
  $region1: #{tpu_custom_call.1} parent=0
    #allocation4 [shape = 'u8[8192]{0}', space=vmem, size = 0x2000, scoped, tag = 'input window, operand 0']
    #allocation5 [shape = 's32[2]{0}', space=sflag, size = 0x8, scoped, tag = 'scoped memory for tpu_custom_call.1']
    #allocation6 [shape = 's32[2]{0}', space=sflag, size = 0x8, scoped, tag = 'scoped memory for tpu_custom_call.1']
    #allocation7 [shape = 'u8[8192]{0}', space=vmem, size = 0x2000, scoped, tag = 'input window, operand 1']
    #allocation8 [shape = 's32[2]{0}', space=sflag, size = 0x8, scoped, tag = 'scoped memory for tpu_custom_call.1']
    #allocation9 [shape = 'u8[1024]{0}', space=vmem, size = 0x400, scoped, tag = 'output window, operand 0']
    #allocation10 [shape = 'u8[1024]{0}', space=vmem, size = 0x400, scoped, tag = 'output window, operand 1']
    #allocation11 [shape = 's32[2]{0}', space=sflag, size = 0x8, scoped, tag = 'scoped memory for tpu_custom_call.1']
    %9 = vsyncpa [#allocation5], 0
    %s10 = scalar_lea.sflag [#allocation5], 1
    %11 = vsyncpa %s10, 0
    %12 = vsyncpa [#allocation8], 0
    %s13 = scalar_lea.sflag [#allocation8], 1
    %14 = vsyncpa %s13, 0
    %15 = vsyncpa [#allocation6], 0
    %s16 = scalar_lea.sflag [#allocation6], 1
    %17 = vsyncpa %s16, 0
    %18 = vsyncpa [#allocation11], 0
    %s19 = scalar_lea.sflag [#allocation11], 1
    %20 = vsyncpa %s19, 0
    loop: start=0, step=1, limit=4
    $region2: #{tpu_custom_call.1} parent=1 // loop_pre_header
      _
    $region3: #{tpu_custom_call.1} parent=1 // loop_header
      %s22 = sphi 0, %s26
      %p23 = scmp.ge.s32.totalorder %s22, 4
      %s29 = sphi 0, %s48
      %s30 = sphi 0, %s44
      %s31 = sphi 0, %s40
      %s32 = sphi 0, %s29
      %s33 = sphi 0, %s30
      %s34 = sphi 0, %s31
      %s35 = sphi 0, %s32
      %s36 = sphi 0, %s33
      %s37 = sphi 0, %s34
      %s55 = sphi 0, %s57
      %s58 = sphi 0, %s55
      %s59 = sphi 0, %s58
      %s75 = sphi 0, %s59
      %s85 = sphi 0, %s87
      %s88 = sphi 0, %s85
      %s89 = sphi 0, %s88
      %s105 = sphi 0, %s89
      %s113 = sphi 0, %s115
      %s116 = sphi 0, %s113
      %s117 = sphi 0, %s116
      %s133 = sphi 0, %s117
      %s141 = sphi 0, %s143
      %s144 = sphi 0, %s141
      %s145 = sphi 0, %s144
      %s161 = sphi 0, %s145
    $region4: #{tpu_custom_call.1} parent=1 // loop_header_branch
      %25 = sbr.rel (%p23) target = $region8
    $region5: #{tpu_custom_call.1} parent=1 // loop_body
      %s27 = ssub.s32 %s22, 1
      %s28 = ssub.s32 %s22, 2
      %s38 = sadd.s32 1, %s31
      %p39 = scmp.ge.s32.totalorder %s38, 1
      %s40 = scalar_select %p39, 0, %s38
      %s41 = sadd.s32 1, %s30
      %s42 = scalar_select %p39, %s41, %s30
      %p43 = scmp.ge.s32.totalorder %s42, 1
      %s44 = scalar_select %p43, 0, %s42
      %s45 = sadd.s32 1, %s29
      %s46 = scalar_select %p43, %s45, %s29
      %p47 = scmp.ge.s32.totalorder %s46, 2
      %s48 = scalar_select %p47, 0, %s46
      %s49 = sadd.s32 %s30, %s31
      %s50 = sadd.s32 %s44, %s40
      %s51 = ssub.s32 %s29, %s48
      %s52 = ssub.s32 %s49, %s50
      %s53 = sor.u32 %s51, %s52
      %p54 = scmp.eq.s32.totalorder %s53, 0
      %s56 = sadd.s32 %s55, 1
      %s57 = scalar_select %p54, %s55, %s56
      %p60 = pneg %p54
      %p61 = scmp.eq.s32.totalorder %s22, 1
      %p62 = por %p60, %p61
      %p63 = scmp.ne.s32.totalorder %s55, %s58
      %p64 = scmp.eq.s32.totalorder %s22, 0
      %p65 = por %p63, %p64
      %p66 = scmp.ne.s32.totalorder %s55, %s58
      %p67 = scmp.eq.s32.totalorder %s27, 1
      %p68 = por %p66, %p67
      %p69 = scmp.ne.s32.totalorder %s58, %s59
      %p70 = scmp.eq.s32.totalorder %s27, 0
      %p71 = por %p69, %p70
      %p72 = scmp.ne.s32.totalorder %s58, %s59
      %p73 = scmp.eq.s32.totalorder %s28, 1
      %p74 = por %p72, %p73
      %p76 = scmp.ne.s32.totalorder %s59, %s75
      %p77 = scmp.eq.s32.totalorder %s28, 0
      %p78 = por %p76, %p77
      %s79 = sadd.s32 %s30, %s31
      %s80 = sadd.s32 %s44, %s40
      %s81 = ssub.s32 %s29, %s48
      %s82 = ssub.s32 %s79, %s80
      %s83 = sor.u32 %s81, %s82
      %p84 = scmp.eq.s32.totalorder %s83, 0
      %s86 = sadd.s32 %s85, 1
      %s87 = scalar_select %p84, %s85, %s86
      %p90 = pneg %p84
      %p91 = scmp.eq.s32.totalorder %s22, 1
      %p92 = por %p90, %p91
      %p93 = scmp.ne.s32.totalorder %s85, %s88
      %p94 = scmp.eq.s32.totalorder %s22, 0
      %p95 = por %p93, %p94
      %p96 = scmp.ne.s32.totalorder %s85, %s88
      %p97 = scmp.eq.s32.totalorder %s27, 1
      %p98 = por %p96, %p97
      %p99 = scmp.ne.s32.totalorder %s88, %s89
      %p100 = scmp.eq.s32.totalorder %s27, 0
      %p101 = por %p99, %p100
      %p102 = scmp.ne.s32.totalorder %s88, %s89
      %p103 = scmp.eq.s32.totalorder %s28, 1
      %p104 = por %p102, %p103
      %p106 = scmp.ne.s32.totalorder %s89, %s105
      %p107 = scmp.eq.s32.totalorder %s28, 0
      %p108 = por %p106, %p107
      %s109 = ssub.s32 %s29, %s48
      %s110 = ssub.s32 %s30, %s44
      %s111 = sor.u32 %s109, %s110
      %p112 = scmp.eq.s32.totalorder %s111, 0
      %s114 = sadd.s32 %s113, 1
      %s115 = scalar_select %p112, %s113, %s114
      %p118 = pneg %p112
      %p119 = scmp.eq.s32.totalorder %s22, 1
      %p120 = por %p118, %p119
      %p121 = scmp.ne.s32.totalorder %s113, %s116
      %p122 = scmp.eq.s32.totalorder %s22, 0
      %p123 = por %p121, %p122
      %p124 = scmp.ne.s32.totalorder %s113, %s116
      %p125 = scmp.eq.s32.totalorder %s27, 1
      %p126 = por %p124, %p125
      %p127 = scmp.ne.s32.totalorder %s116, %s117
      %p128 = scmp.eq.s32.totalorder %s27, 0
      %p129 = por %p127, %p128
      %p130 = scmp.ne.s32.totalorder %s116, %s117
      %p131 = scmp.eq.s32.totalorder %s28, 1
      %p132 = por %p130, %p131
      %p134 = scmp.ne.s32.totalorder %s117, %s133
      %p135 = scmp.eq.s32.totalorder %s28, 0
      %p136 = por %p134, %p135
      %s137 = ssub.s32 %s29, %s48
      %s138 = ssub.s32 %s30, %s44
      %s139 = sor.u32 %s137, %s138
      %p140 = scmp.eq.s32.totalorder %s139, 0
      %s142 = sadd.s32 %s141, 1
      %s143 = scalar_select %p140, %s141, %s142
      %p146 = pneg %p140
      %p147 = scmp.eq.s32.totalorder %s22, 1
      %p148 = por %p146, %p147
      %p149 = scmp.ne.s32.totalorder %s141, %s144
      %p150 = scmp.eq.s32.totalorder %s22, 0
      %p151 = por %p149, %p150
      %p152 = scmp.ne.s32.totalorder %s141, %s144
      %p153 = scmp.eq.s32.totalorder %s27, 1
      %p154 = por %p152, %p153
      %p155 = scmp.ne.s32.totalorder %s144, %s145
      %p156 = scmp.eq.s32.totalorder %s27, 0
      %p157 = por %p155, %p156
      %p158 = scmp.ne.s32.totalorder %s144, %s145
      %p159 = scmp.eq.s32.totalorder %s28, 1
      %p160 = por %p158, %p159
      %p162 = scmp.ne.s32.totalorder %s145, %s161
      %p163 = scmp.eq.s32.totalorder %s28, 0
      %p164 = por %p162, %p163
      %p165 = scmp.le.s32.totalorder 1, %s22
      %p166 = scmp.lt.s32.totalorder %s22, 3
      %p167 = pnand %p165, %p166
      %p168 = pneg %p167
      // Predicated region
      $region9: #{tpu_custom_call.1} parent=5 // pred_check
        _
      $region10: #{tpu_custom_call.1} parent=5 // pred_check_branch
        %170 = sbr.rel (%p167) target = $region12
      $region11: #{tpu_custom_call.1} parent=5 // pred_region
        %s171 = ssub.s32 %s22, 1
      $region12: #{tpu_custom_call.1} parent=5 // pred_fallthru
        _
      %p172 = scmp.lt.s32.totalorder %s22, 2
      // Predicated region
      $region13: #{tpu_custom_call.1} parent=5 // pred_check
        %p173 = pneg %p172
      $region14: #{tpu_custom_call.1} parent=5 // pred_check_branch
        %175 = sbr.rel (%p173) target = $region16
      $region15: #{tpu_custom_call.1} parent=5 // pred_region
        // Predicated region
        $region17: #{tpu_custom_call.1} parent=15 // pred_check
          %p176 = pneg %p65
        $region18: #{tpu_custom_call.1} parent=15 // pred_check_branch
          %178 = sbr.rel (%p176) target = $region20
        $region19: #{tpu_custom_call.1} parent=15 // pred_region
          %s179 = sand.u32 %s55, 1
          %s180 = scalar_lea.sflag [#allocation5], %s179
          %s181 = sand.u32 %s55, 1
          %s182 = smul.addr %s181, 8
          %s183 = scalar_lea.vmem [#allocation4], %s182
          %s184 = sadd.s32 %s30, %s31
          %s185 = smul.u32 2, %s184
          %s187 = ssub.s32 128, 128
          %188 = vsyncadd %s180, %s187
          %s189 = smul.addr %s29, 2
          %s190 = sadd.s32 %s185, %s189
          %s191 = smul.addr %s190, 64
          %s192 = scalar_lea.hbm %s0, %s191
          %s194 = sshll.u32 %s183, 4
          %s195 = int_to_ptr.vmem [resolvable:$true] %s194
          %197 = dma.hbm_to_vmem [thread:$0]  %s192, 128, %s195, %s180
        $region20: #{tpu_custom_call.1} parent=15 // pred_fallthru
          _
        // Predicated region
        $region21: #{tpu_custom_call.1} parent=15 // pred_check
          %p198 = pneg %p95
        $region22: #{tpu_custom_call.1} parent=15 // pred_check_branch
          %200 = sbr.rel (%p198) target = $region24
        $region23: #{tpu_custom_call.1} parent=15 // pred_region
          %s201 = sand.u32 %s85, 1
          %s202 = scalar_lea.sflag [#allocation8], %s201
          %s203 = sand.u32 %s85, 1
          %s204 = smul.addr %s203, 8
          %s205 = scalar_lea.vmem [#allocation7], %s204
          %s206 = sadd.s32 %s30, %s31
          %s207 = smul.u32 2, %s206
          %s209 = ssub.s32 128, 128
          %210 = vsyncadd %s202, %s209
          %s211 = smul.addr %s29, 2
          %s212 = sadd.s32 %s207, %s211
          %s213 = smul.addr %s212, 64
          %s214 = scalar_lea.hbm %s1, %s213
          %s216 = sshll.u32 %s205, 4
          %s217 = int_to_ptr.vmem [resolvable:$true] %s216
          %219 = dma.hbm_to_vmem [thread:$0]  %s214, 128, %s217, %s202
        $region24: #{tpu_custom_call.1} parent=15 // pred_fallthru
          _
      $region16: #{tpu_custom_call.1} parent=5 // pred_fallthru
        _
      %p220 = scmp.le.s32.totalorder 1, %s22
      %p221 = scmp.lt.s32.totalorder %s22, 3
      %p222 = pnand %p220, %p221
      %p223 = pneg %p222
      // Predicated region
      $region25: #{tpu_custom_call.1} parent=5 // pred_check
        _
      $region26: #{tpu_custom_call.1} parent=5 // pred_check_branch
        %225 = sbr.rel (%p222) target = $region28
      $region27: #{tpu_custom_call.1} parent=5 // pred_region
        %s226 = ssub.s32 %s22, 1
        %s227 = sand.u32 %s58, 1
        %s228 = scalar_lea.sflag [#allocation5], %s227
        %s229 = sand.u32 %s58, 1
        %s230 = smul.addr %s229, 8
        %s231 = scalar_lea.vmem [#allocation4], %s230
        // Predicated region
        $region29: #{tpu_custom_call.1} parent=27 // pred_check
          %p232 = pneg %p71
        $region30: #{tpu_custom_call.1} parent=27 // pred_check_branch
          %234 = sbr.rel (%p232) target = $region32
        $region31: #{tpu_custom_call.1} parent=27 // pred_region
          %235 = dma.done %s228, 128
        $region32: #{tpu_custom_call.1} parent=27 // pred_fallthru
          _
        %s236 = sand.u32 %s88, 1
        %s237 = scalar_lea.sflag [#allocation8], %s236
        %s238 = sand.u32 %s88, 1
        %s239 = smul.addr %s238, 8
        %s240 = scalar_lea.vmem [#allocation7], %s239
        // Predicated region
        $region33: #{tpu_custom_call.1} parent=27 // pred_check
          %p241 = pneg %p101
        $region34: #{tpu_custom_call.1} parent=27 // pred_check_branch
          %243 = sbr.rel (%p241) target = $region36
        $region35: #{tpu_custom_call.1} parent=27 // pred_region
          %244 = dma.done %s237, 128
        $region36: #{tpu_custom_call.1} parent=27 // pred_fallthru
          _
        %s245 = sand.u32 %s58, 1
        %s246 = scalar_lea.sflag [#allocation5], %s245
        %s247 = sand.u32 %s58, 1
        %s248 = smul.addr %s247, 8
        %s249 = scalar_lea.vmem [#allocation4], %s248
        %p250 = pneg %p71
        %p251 = pneg %p68
        %s252 = sand.u32 %s88, 1
        %s253 = scalar_lea.sflag [#allocation8], %s252
        %s254 = sand.u32 %s88, 1
        %s255 = smul.addr %s254, 8
        %s256 = scalar_lea.vmem [#allocation7], %s255
        %p257 = pneg %p101
        %p258 = pneg %p98
        %p259 = pneg %p129
        %p260 = pneg %p126
        %s261 = sand.u32 %s116, 1
        %s262 = scalar_lea.sflag [#allocation6], %s261
        %s263 = sand.u32 %s116, 1
        %s264 = scalar_lea.vmem [#allocation9], %s263
        %p265 = pneg %p157
        %p266 = pneg %p154
        %s267 = sand.u32 %s144, 1
        %s268 = scalar_lea.sflag [#allocation11], %s267
        %s269 = sand.u32 %s144, 1
        %s270 = scalar_lea.vmem [#allocation10], %s269
        %s271 = sadd.s32 %s33, %s34
        %s272 = smul.u32 2, %s271
        %s273 = sadd.s32 %s33, %s34
        %s274 = smul.u32 2, %s273
        %p275 = scmp.eq.s32.totalorder %s34, 0
        // Predicated region
        $region37: #{tpu_custom_call.1} parent=27 // pred_check
          %p276 = pneg %p275
        $region38: #{tpu_custom_call.1} parent=27 // pred_check_branch
          %278 = sbr.rel (%p276) target = $region40
        $region39: #{tpu_custom_call.1} parent=27 // pred_region
          %279 = vst [vmem:[#allocation2] sm:$0xff] 0.0
          %280 = vst [vmem:[#allocation3] sm:$0xff] 0.0
        $region40: #{tpu_custom_call.1} parent=27 // pred_fallthru
          _
        %v281 = vld [vmem:[%s231] sm:$0xff]
        %v282 = vld [vmem:[%s240] sm:$0xff]
        %v284 = vcombine.high %v281, %v281
        %vm286 = vcmask 1043456
        %v287 = vsel %vm286, %v281, -inf
        %v288 = vrot.slane %v287, 4
        %v289 = vmax.f32 %v287, %v288
        %v290 = vrot.slane %v289, 2
        %v291 = vmax.f32 %v289, %v290
        %v292 = vrot.slane %v291, 1
        %v293 = vmax.f32 %v291, %v292
        %v294 = vsel %vm286, %v284, -inf
        %v295 = vrot.slane %v294, 4
        %v296 = vmax.f32 %v294, %v295
        %v297 = vrot.slane %v296, 2
        %v298 = vmax.f32 %v296, %v297
        %v299 = vrot.slane %v298, 1
        %v300 = vmax.f32 %v298, %v299
        %v303 = vcombine.low %v293, %v300
        %v305 = vsub.f32 %v281, %v303
        %v306 = vmul.f32 %v305, 1.442695
        %v307 = vpow.pop %v306
        %v309 = vcombine.high %v307, %v307
        %v311 = vsel %vm286, %v307, 0.0
        %v312 = vrot.slane %v311, 4
        %v313 = vadd.f32 %v311, %v312
        %v314 = vrot.slane %v313, 2
        %v315 = vadd.f32 %v313, %v314
        %v316 = vrot.slane %v315, 1
        %v317 = vadd.f32 %v315, %v316
        %v318 = vsel %vm286, %v309, 0.0
        %v319 = vrot.slane %v318, 4
        %v320 = vadd.f32 %v318, %v319
        %v321 = vrot.slane %v320, 2
        %v322 = vadd.f32 %v320, %v321
        %v323 = vrot.slane %v322, 1
        %v324 = vadd.f32 %v322, %v323
        %v325 = vrcp.pop %v317
        %v326 = vrcp.pop %v324
        %v329 = vcombine.low %v325, %v326
        %v331 = vmul.f32 %v307, %v329
        %v332 = vmul.f32 %v331, %v282
        %v333 = vld [vmem:[#allocation2] sm:$0xff]
        %v334 = vadd.f32 %v333, %v332
        %335 = vst [vmem:[#allocation2] sm:$0xff] %v334
        %v336 = vld [vmem:[#allocation3] sm:$0xff]
        %v337 = vadd.f32 %v336, %v282
        %338 = vst [vmem:[#allocation3] sm:$0xff] %v337
        // Predicated region
        $region41: #{tpu_custom_call.1} parent=27 // pred_check
          %p339 = pneg %p275
        $region42: #{tpu_custom_call.1} parent=27 // pred_check_branch
          %341 = sbr.rel (%p339) target = $region44
        $region43: #{tpu_custom_call.1} parent=27 // pred_region
          %v342 = vld [vmem:[#allocation2] sm:$0xff]
          %v344 = vcombine.high %v342, %v342
          %v346 = vsel %vm286, %v342, 0.0
          %v347 = vsel %vm286, %v344, 0.0
          %v348 = vadd.f32 %v346, %v347
          %349 = vadd.xlane.f32.xlu0 %v348
          %v350 = vpop.xlane.xlu0 %349
          %v351 = vrot.slane %v350, 4
          %v352 = vadd.f32 %v350, %v351
          %v353 = vrot.slane %v352, 2
          %v354 = vadd.f32 %v352, %v353
          %v355 = vrot.slane %v354, 1
          %v356 = vadd.f32 %v354, %v355
          %s357 = vtos %v356
          %v358 = vld [vmem:[#allocation3] sm:$0xff]
          %v360 = vcombine.high %v358, %v358
          %v362 = vsel %vm286, %v358, 0.0
          %v363 = vsel %vm286, %v360, 0.0
          %v364 = vadd.f32 %v362, %v363
          %365 = vadd.xlane.f32.xlu0 %v364
          %v366 = vpop.xlane.xlu0 %365
          %v367 = vrot.slane %v366, 4
          %v368 = vadd.f32 %v366, %v367
          %v369 = vrot.slane %v368, 2
          %v370 = vadd.f32 %v368, %v369
          %v371 = vrot.slane %v370, 1
          %v372 = vadd.f32 %v370, %v371
          %s373 = vtos %v372
          %v374 = vstv %s357
          %375 = vst [vmem:[%s264] sm:$0x1] %v374
          %v376 = vstv %s373
          %377 = vst [vmem:[%s270] sm:$0x1] %v376
        $region44: #{tpu_custom_call.1} parent=27 // pred_fallthru
          _
        %s378 = sand.u32 %s116, 1
        %s379 = scalar_lea.sflag [#allocation6], %s378
        %s380 = sand.u32 %s116, 1
        %s381 = scalar_lea.vmem [#allocation9], %s380
        %s382 = sand.u32 %s144, 1
        %s383 = scalar_lea.sflag [#allocation11], %s382
        %s384 = sand.u32 %s144, 1
        %s385 = scalar_lea.vmem [#allocation10], %s384
        // Predicated region
        $region45: #{tpu_custom_call.1} parent=27 // pred_check
          %p386 = pneg %p126
        $region46: #{tpu_custom_call.1} parent=27 // pred_check_branch
          %388 = sbr.rel (%p386) target = $region48
        $region47: #{tpu_custom_call.1} parent=27 // pred_region
          %s390 = ssub.s32 16, 16
          %391 = vsyncadd %s379, %s390
          %s392 = sadd.s32 %s33, %s32
          %s393 = smul.addr %s392, 16
          %s394 = scalar_lea.hbm %s2, %s393
          %s396 = sshll.u32 %s381, 4
          %s397 = int_to_ptr.vmem [resolvable:$true] %s396
          %399 = dma.vmem_to_hbm [thread:$0]  %s397, 16, %s394, %s379
        $region48: #{tpu_custom_call.1} parent=27 // pred_fallthru
          _
        // Predicated region
        $region49: #{tpu_custom_call.1} parent=27 // pred_check
          %p400 = pneg %p154
        $region50: #{tpu_custom_call.1} parent=27 // pred_check_branch
          %402 = sbr.rel (%p400) target = $region52
        $region51: #{tpu_custom_call.1} parent=27 // pred_region
          %s404 = ssub.s32 16, 16
          %405 = vsyncadd %s383, %s404
          %s406 = sadd.s32 %s33, %s32
          %s407 = smul.addr %s406, 16
          %s408 = scalar_lea.hbm %s3, %s407
          %s410 = sshll.u32 %s385, 4
          %s411 = int_to_ptr.vmem [resolvable:$true] %s410
          %413 = dma.vmem_to_hbm [thread:$0]  %s411, 16, %s408, %s383
        $region52: #{tpu_custom_call.1} parent=27 // pred_fallthru
          _
      $region28: #{tpu_custom_call.1} parent=5 // pred_fallthru
        _
      %p414 = scmp.le.s32.totalorder 2, %s22
      // Predicated region
      $region53: #{tpu_custom_call.1} parent=5 // pred_check
        %p415 = pneg %p414
      $region54: #{tpu_custom_call.1} parent=5 // pred_check_branch
        %417 = sbr.rel (%p415) target = $region56
      $region55: #{tpu_custom_call.1} parent=5 // pred_region
        %s418 = ssub.s32 %s22, 2
        // Predicated region
        $region57: #{tpu_custom_call.1} parent=55 // pred_check
          %p419 = pneg %p132
        $region58: #{tpu_custom_call.1} parent=55 // pred_check_branch
          %421 = sbr.rel (%p419) target = $region60
        $region59: #{tpu_custom_call.1} parent=55 // pred_region
          %s422 = sand.u32 %s117, 1
          %s423 = scalar_lea.sflag [#allocation6], %s422
          %s424 = sand.u32 %s117, 1
          %s425 = scalar_lea.vmem [#allocation9], %s424
          %426 = dma.done %s423, 16
        $region60: #{tpu_custom_call.1} parent=55 // pred_fallthru
          _
        // Predicated region
        $region61: #{tpu_custom_call.1} parent=55 // pred_check
          %p427 = pneg %p160
        $region62: #{tpu_custom_call.1} parent=55 // pred_check_branch
          %429 = sbr.rel (%p427) target = $region64
        $region63: #{tpu_custom_call.1} parent=55 // pred_region
          %s430 = sand.u32 %s145, 1
          %s431 = scalar_lea.sflag [#allocation11], %s430
          %s432 = sand.u32 %s145, 1
          %s433 = scalar_lea.vmem [#allocation10], %s432
          %434 = dma.done %s431, 16
        $region64: #{tpu_custom_call.1} parent=55 // pred_fallthru
          _
      $region56: #{tpu_custom_call.1} parent=5 // pred_fallthru
        _
    $region6: #{tpu_custom_call.1} parent=1 // loop_footer
      %s26 = sadd.s32 1, %s22
    $region7: #{tpu_custom_call.1} parent=1 // loop_footer_branch
      %21 = sbr.rel target = $region3
    $region8: #{tpu_custom_call.1} parent=1 // loop_exit
      _
    %435 = vsyncpa [#allocation5], 1
    %s436 = scalar_lea.sflag [#allocation5], 1
    %437 = vsyncpa %s436, 1
    %438 = vsyncpa [#allocation8], 1
    %s439 = scalar_lea.sflag [#allocation8], 1
    %440 = vsyncpa %s439, 1
    %441 = vsyncpa [#allocation6], 1
    %s442 = scalar_lea.sflag [#allocation6], 1
    %443 = vsyncpa %s442, 1
    %444 = vsyncpa [#allocation11], 1
    %s445 = scalar_lea.sflag [#allocation11], 1
    %446 = vsyncpa %s445, 1

</llo_original>
